<compile_context>
chip_gen: v7x
topology: tpu7x:2x2x1
jax: 0.10.0
libtpu: 0.0.40
codegen_flags: <defaults>
</compile_context>

<pallas_src>
import math

import jax
import jax.numpy as jnp
import numpy as np
from jax import lax
from jax.experimental import pallas as pl
from jax.experimental.pallas import tpu as pltpu


def _make_kernel(chunk):
    """Build the per-tile kernel for a static row-chunk size.

    meta_ref : [TR, 3] f32  col0 = valid prefix length (f32)
                            col1 = w_aligned = label / max(len, 1)
                            col2 = w_mis     = 1.0 iff (label == 0 and len > 0)
    sim_ref  : [TR, C] f32  similarity scores (OOB rows of a ragged last tile
                            are garbage; neutralised by the padded meta rows)
    out_ref  : [8, 128] f32 per-tile partial sum at [0, 0]; zeros elsewhere
    """

    def kernel(meta_ref, sim_ref, out_ref):
        TR, C = sim_ref.shape
        n_chunks = TR // chunk

        # Lane-index iota hoisted out of the chunk loop (JAX does not CSE it).
        col = lax.broadcasted_iota(jnp.int32, (chunk, C), 1).astype(jnp.float32)

        def body(ci, acc):
            r0 = pl.multiple_of(ci * chunk, chunk)
            x = sim_ref[pl.ds(r0, chunk), :]                     # [chunk, C]
            m = meta_ref[pl.ds(r0, chunk), :]                    # [chunk, 3]
            length = m[:, 0:1]
            w_al = m[:, 1:2]
            w_mis = m[:, 2:3]

            # One mask application shared by both branches (+inf sentinel).
            masked_x = jnp.where(col < length, x, jnp.inf)

            # Aligned rows: mean(relu(-x + 0.001)) over the valid prefix; the
            # divide is precomputed in the wrapper (w_al = 1/len).
            relu_neg = jnp.maximum(jnp.float32(0.001) - masked_x,
                                   jnp.float32(0.0))
            aligned_row = jnp.sum(relu_neg, axis=-1, keepdims=True) * w_al

            # Misaligned rows: leaky_relu(min + 0.15), slope 0.01.  Select
            # (not multiply) keeps inf of fully-masked rows out of the loss.
            row_min = jnp.min(masked_x, axis=-1, keepdims=True)
            v = row_min + jnp.float32(0.15)
            leaky = jnp.where(v > 0.0, v, jnp.float32(0.01) * v)
            mis_row = jnp.where(w_mis > 0.0, leaky, jnp.float32(0.0))

            return acc + jnp.sum(aligned_row + mis_row)

        tile_sum = lax.fori_loop(0, n_chunks, body, jnp.float32(0.0))

        # Lane-dense (8, 128) output block: partial at [0, 0], zeros elsewhere.
        r = lax.broadcasted_iota(jnp.int32, (8, 128), 0)
        c = lax.broadcasted_iota(jnp.int32, (8, 128), 1)
        out_ref[...] = jnp.where((r == 0) & (c == 0), tile_sum,
                                 jnp.float32(0.0))

    return kernel


def mn_loss(sim_neg, train_mn_label, mn_length, *, row_tile=4096):
    """Pallas TPU implementation of MNLoss.forward. Returns shape (1,) f32."""
    sim_neg = jnp.asarray(sim_neg, jnp.float32)
    label = jnp.asarray(train_mn_label, jnp.int32)
    length = jnp.asarray(mn_length, jnp.int32)
    R, C = sim_neg.shape

    # Row tile: multiple of 8, capped at ~half the rows (rounded up to 8) so
    # the "parallel" grid axis has >= 2 steps whenever possible (v7x megacore).
    row_tile = max(8, ((int(row_tile) + 7) // 8) * 8)
    half = max(8, ((-(-R // 2) + 7) // 8) * 8)
    row_tile = min(row_tile, half)

    # In-kernel strip-mine chunk: power-of-two (>= 8) divisor of row_tile,
    # capped at 256 rows, so whole-tile temporaries don't blow the vreg file.
    chunk = math.gcd(row_tile, 256)

    num_tiles = -(-R // row_tile)
    rp = num_tiles * row_tile

    # Per-row metadata (f32): [len, w_aligned, w_mis].  Only this tiny array
    # is padded to the grid extent; sim_neg is NOT padded or copied.
    len_f = length.astype(jnp.float32)
    w_al = jnp.where(label == 1, 1.0 / jnp.maximum(len_f, 1.0),
                     0.0).astype(jnp.float32)
    w_mis = jnp.where((label == 0) & (length > 0), 1.0,
                      0.0).astype(jnp.float32)
    meta = jnp.stack([len_f, w_al, w_mis], axis=1)           # (R, 3) f32
    if rp != R:
        meta = jnp.pad(meta, ((0, rp - R), (0, 0)))          # zero rows -> 0 loss

    out = pl.pallas_call(
        _make_kernel(chunk),
        out_shape=jax.ShapeDtypeStruct((num_tiles * 8, 128), jnp.float32),
        grid_spec=pltpu.PrefetchScalarGridSpec(
            num_scalar_prefetch=0,
            grid=(num_tiles,),
            in_specs=[
                pl.BlockSpec((row_tile, 3), lambda i: (i, 0)),
                pl.BlockSpec((row_tile, C), lambda i: (i, 0)),
            ],
            out_specs=pl.BlockSpec((8, 128), lambda i: (i, 0)),
        ),
        compiler_params=pltpu.CompilerParams(
            dimension_semantics=("parallel",)),
    )(meta, sim_neg)

    # Tiny final reduction over per-tile partials (all other positions are 0).
    return jnp.sum(out).reshape(1)


def _reference_numpy(sim_neg, label, length):
    sim_neg = np.asarray(sim_neg, np.float64)
    label = np.asarray(label)
    length = np.asarray(length)
    total = 0.0
    for i in range(sim_neg.shape[0]):
        row = sim_neg[i, : length[i]]
        if label[i] == 1:
            total += np.mean(np.maximum(-row + 0.001, 0.0))
        else:
            m = np.min(row) + 0.15
            total += m if m > 0 else 0.01 * m
    return np.array([total], np.float32)


if __name__ == "__main__":
    key = jax.random.PRNGKey(0)

    # Main case: 2N = 8 rows, 100 negatives per row (matches module spec).
    k1, k2 = jax.random.split(key)
    R, C = 8, 100
    sim_neg = jax.random.uniform(k1, (R, C), jnp.float32, minval=-1.0, maxval=1.0)
    train_mn_label = jnp.array([1, 0, 1, 0, 1, 0, 1, 0], jnp.int32)
    mn_length = jax.random.randint(k2, (R,), 1, C + 1, jnp.int32)

    out = mn_loss(sim_neg, train_mn_label, mn_length)
    out = jax.block_until_ready(out)
    ref = _reference_numpy(np.asarray(sim_neg), np.asarray(train_mn_label),
                           np.asarray(mn_length))
    np.testing.assert_allclose(np.asarray(out), ref, rtol=1e-5, atol=1e-5)

    # Secondary case: multi-tile grid with a ragged last tile (R not a
    # multiple of the tile; sim_neg is NOT padded, only meta is).
    k3, k4, k5 = jax.random.split(jax.random.PRNGKey(1), 3)
    R2 = 52
    sim_neg2 = jax.random.uniform(k3, (R2, C), jnp.float32, minval=-1.0, maxval=1.0)
    train_mn_label2 = jax.random.randint(k4, (R2,), 0, 2, jnp.int32)
    mn_length2 = jax.random.randint(k5, (R2,), 1, C + 1, jnp.int32)

    out2 = mn_loss(sim_neg2, train_mn_label2, mn_length2, row_tile=16)
    out2 = jax.block_until_ready(out2)
    ref2 = _reference_numpy(np.asarray(sim_neg2), np.asarray(train_mn_label2),
                            np.asarray(mn_length2))
    np.testing.assert_allclose(np.asarray(out2), ref2, rtol=1e-5, atol=1e-5)

    print("KERNEL_OK")
</pallas_src>

<mosaic_0001>
module attributes {stable_mosaic.version = 11 : i64} {
  func.func @kernel(%arg0: i32, %arg1: memref<8x3xf32, #tpu.memory_space<vmem>>, %arg2: memref<8x100xf32, #tpu.memory_space<vmem>>, %arg3: memref<8x128xf32, #tpu.memory_space<vmem>>) attributes {dimension_semantics = [#tpu.dimension_semantics<parallel>], iteration_bounds = array<i64: 1>, scalar_prefetch = 0 : i64, scratch_operands = 0 : i64, tpu.core_type = #tpu.core_type<tc>, window_params = [{transform_indices = @transform_0, window_bounds = array<i64: 8, 3>}, {transform_indices = @transform_1, window_bounds = array<i64: 8, 100>}, {transform_indices = @transform_2, window_bounds = array<i64: 8, 128>}]} {
    %0 = tpu.iota {dimensions = array<i32: 1>} : vector<8x100xi32>
    %1 = arith.sitofp %0 : vector<8x100xi32> to vector<8x100xf32>
    %cst = arith.constant 0.000000e+00 : f32
    %c0_i32 = arith.constant 0 : i32
    %c8_i32 = arith.constant 8 : i32
    %2 = arith.muli %c0_i32, %c8_i32 : i32
    %3 = tpu.assume_multiple %2, 8 : i32
    %4 = arith.index_cast %3 : i32 to index
    %c0 = arith.constant 0 : index
    %5 = vector.load %arg2[%4, %c0] : memref<8x100xf32, #tpu.memory_space<vmem>>, vector<8x100xf32>
    %6 = arith.index_cast %3 : i32 to index
    %c0_0 = arith.constant 0 : index
    %7 = vector.load %arg1[%6, %c0_0] : memref<8x3xf32, #tpu.memory_space<vmem>>, vector<8x3xf32>
    %8 = vector.extract_strided_slice %7 {offsets = [0, 0], sizes = [8, 1], strides = [1, 1]} : vector<8x3xf32> to vector<8x1xf32>
    %9 = vector.extract_strided_slice %7 {offsets = [0, 1], sizes = [8, 1], strides = [1, 1]} : vector<8x3xf32> to vector<8x1xf32>
    %10 = vector.extract_strided_slice %7 {offsets = [0, 2], sizes = [8, 1], strides = [1, 1]} : vector<8x3xf32> to vector<8x1xf32>
    %11 = vector.broadcast %8 : vector<8x1xf32> to vector<8x100xf32>
    %12 = arith.cmpf olt, %1, %11 : vector<8x100xf32>
    %cst_1 = arith.constant 0x7F800000 : f32
    %13 = vector.broadcast %cst_1 : f32 to vector<8x100xf32>
    %14 = arith.select %12, %5, %13 : vector<8x100xi1>, vector<8x100xf32>
    %cst_2 = arith.constant 1.000000e-03 : f32
    %15 = vector.broadcast %cst_2 : f32 to vector<8x100xf32>
    %16 = arith.subf %15, %14 : vector<8x100xf32>
    %cst_3 = arith.constant 0.000000e+00 : f32
    %17 = vector.broadcast %cst_3 : f32 to vector<8x100xf32>
    %18 = arith.maximumf %16, %17 : vector<8x100xf32>
    %cst_4 = arith.constant dense<0.000000e+00> : vector<8xf32>
    %19 = vector.multi_reduction <add>, %18, %cst_4 [1] : vector<8x100xf32> to vector<8xf32>
    %20 = vector.shape_cast %19 : vector<8xf32> to vector<8x1xf32>
    %21 = arith.mulf %20, %9 : vector<8x1xf32>
    %cst_5 = arith.constant dense<0x7F800000> : vector<8xf32>
    %22 = vector.multi_reduction <minimumf>, %14, %cst_5 [1] : vector<8x100xf32> to vector<8xf32>
    %23 = vector.shape_cast %22 : vector<8xf32> to vector<8x1xf32>
    %cst_6 = arith.constant 1.500000e-01 : f32
    %24 = vector.broadcast %cst_6 : f32 to vector<8x1xf32>
    %25 = arith.addf %23, %24 : vector<8x1xf32>
    %cst_7 = arith.constant 0.000000e+00 : f32
    %26 = vector.broadcast %cst_7 : f32 to vector<8x1xf32>
    %27 = arith.cmpf ogt, %25, %26 : vector<8x1xf32>
    %cst_8 = arith.constant 0.00999999977 : f32
    %28 = vector.broadcast %cst_8 : f32 to vector<8x1xf32>
    %29 = arith.mulf %28, %25 : vector<8x1xf32>
    %30 = arith.select %27, %25, %29 : vector<8x1xi1>, vector<8x1xf32>
    %cst_9 = arith.constant 0.000000e+00 : f32
    %31 = vector.broadcast %cst_9 : f32 to vector<8x1xf32>
    %32 = arith.cmpf ogt, %10, %31 : vector<8x1xf32>
    %cst_10 = arith.constant 0.000000e+00 : f32
    %33 = vector.broadcast %cst_10 : f32 to vector<8x1xf32>
    %34 = arith.select %32, %30, %33 : vector<8x1xi1>, vector<8x1xf32>
    %35 = arith.addf %21, %34 : vector<8x1xf32>
    %36 = vector.shape_cast %35 : vector<8x1xf32> to vector<1x8x1xf32>
    %cst_11 = arith.constant dense<0.000000e+00> : vector<1xf32>
    %37 = vector.multi_reduction <add>, %36, %cst_11 [1, 2] : vector<1x8x1xf32> to vector<1xf32>
    %38 = vector.shape_cast %37 : vector<1xf32> to vector<1x1x1xf32>
    %39 = vector.extract %38[0, 0, 0] : f32 from vector<1x1x1xf32>
    %40 = arith.addf %cst, %39 : f32
    %c1_i32 = arith.constant 1 : i32
    %41 = tpu.iota {dimensions = array<i32: 0>} : vector<8x128xi32>
    %42 = tpu.iota {dimensions = array<i32: 1>} : vector<8x128xi32>
    %c0_i32_12 = arith.constant 0 : i32
    %43 = vector.broadcast %c0_i32_12 : i32 to vector<8x128xi32>
    %44 = arith.cmpi eq, %41, %43 : vector<8x128xi32>
    %c0_i32_13 = arith.constant 0 : i32
    %45 = vector.broadcast %c0_i32_13 : i32 to vector<8x128xi32>
    %46 = arith.cmpi eq, %42, %45 : vector<8x128xi32>
    %47 = arith.andi %44, %46 : vector<8x128xi1>
    %cst_14 = arith.constant 0.000000e+00 : f32
    %48 = vector.broadcast %40 : f32 to vector<8x128xf32>
    %49 = vector.broadcast %cst_14 : f32 to vector<8x128xf32>
    %50 = arith.select %47, %48, %49 : vector<8x128xi1>, vector<8x128xf32>
    %c0_15 = arith.constant 0 : index
    %c0_16 = arith.constant 0 : index
    %51 = vector.load %arg3[%c0_15, %c0_16] : memref<8x128xf32, #tpu.memory_space<vmem>>, vector<8x128xf32>
    tpu.vector_store %arg3[%c0_15, %c0_16], %50 {strides = array<i32>} : memref<8x128xf32, #tpu.memory_space<vmem>>, vector<8x128xf32>,
    return
  }
  func.func @transform_0(%arg0: i32) -> (i32, i32) {
    %c0_i32 = arith.constant 0 : i32
    %c0_i32_0 = arith.constant 0 : i32
    return %arg0, %c0_i32 : i32, i32
  }
  func.func @transform_1(%arg0: i32) -> (i32, i32) {
    %c0_i32 = arith.constant 0 : i32
    %c0_i32_0 = arith.constant 0 : i32
    return %arg0, %c0_i32 : i32, i32
  }
  func.func @transform_2(%arg0: i32) -> (i32, i32) {
    %c0_i32 = arith.constant 0 : i32
    %c0_i32_0 = arith.constant 0 : i32
    return %arg0, %c0_i32 : i32, i32
  }
}

</mosaic_0001>

<llo_original>
// kernel: tpu_custom_call.1
$region0: #{tpu_custom_call.1}
  #allocation0 [shape = 'u32[]', space=smem, size = 0x4, offset = 0x4, fixed_abs, tag = 'smem constant byte address 0x4 - core index']
  #allocation1 [shape = 'u32[144,128]{1,0:T(1,128)}', space=vmem, size = 0x12000, scoped, tag = 'internal scratch']
  %s0 = inlined_call_operand.vmem [shape: f32[8,3], index: 0, kind: input, shape index: {}]
  %s1 = inlined_call_operand.vmem [shape: f32[8,100], index: 1, kind: input, shape index: {}]
  %s2 = inlined_call_operand.hbm [shape: f32[8,128], index: 2, kind: output, shape index: {}]
  %s3 = sld [smem:[#allocation0]]
  $region18: #{tpu_custom_call.1} parent=0
    _
  %s5 = ssub.s32 1, %s3
  %s6 = scalar_select 0, %s5, %s3
  $region1: #{tpu_custom_call.1} parent=0
    #allocation2 [shape = 'u8[4096]{0}', space=vmem, size = 0x1000, scoped, tag = 'output window, operand 0, single buffered']
    #allocation3 [shape = 's32[1]{0}', space=sflag, size = 0x4, scoped, tag = 'scoped memory for tpu_custom_call.1']
    %7 = vsyncpa [#allocation3], 0
    // Predicated region
    $region2: #{tpu_custom_call.1} parent=1 // pred_check
      _
    $region3: #{tpu_custom_call.1} parent=1 // pred_check_branch
      %9 = sbr.rel (0) target = $region5
    $region4: #{tpu_custom_call.1} parent=1 // pred_region
      _
    $region5: #{tpu_custom_call.1} parent=1 // pred_fallthru
      _
    // Predicated region
    $region6: #{tpu_custom_call.1} parent=1 // pred_check
      _
    $region7: #{tpu_custom_call.1} parent=1 // pred_check_branch
      %11 = sbr.rel (0) target = $region9
    $region8: #{tpu_custom_call.1} parent=1 // pred_region
      _
    $region9: #{tpu_custom_call.1} parent=1 // pred_fallthru
      _
    %v12 = vlaneseq
    %v13 = vand.u32 %v12, 127
    %v14 = vcvt.s32.f32 %v13
    %v15 = vld [vmem:[%s1] sm:$0xff]
    %v16 = vld [vmem:[%s0] sm:$0xff]
    %18 = vset.pattern.permute.xlu0 0
    %19 = vperm.xlu0 %18, %v16
    %v20 = vpop.permute.xlu0 %19
    %vm22 = vcmp.lt.f32.partialorder %v14, %v20
    %v23 = vsel %vm22, %v15, inf
    %v24 = vsub.f32 0.001, %v23
    %v25 = vmax.f32 %v24, 0.0
    %vm26 = vcmask 818176
    %v27 = vsel %vm26, %v25, 0.0
    %28 = vadd.xlane.f32.xlu0 %v27
    %v29 = vpop.xlane.xlu0 %28
    %v30 = vmul.f32 %v29, %v16
    %v31 = vsel %vm26, %v23, inf
    %32 = vmin.xlane.f32.xlu0 %v31
    %v33 = vpop.xlane.xlu0 %32
    %v34 = vadd.f32 %v33, 0.15
    %vm35 = vcmp.gt.f32.partialorder %v34, 0.0
    %v36 = vmul.f32 %v34, 0.01
    %v37 = vsel %vm35, %v34, %v36
    %vm38 = vcmp.gt.f32.partialorder %v16, 0.0
    %v39 = vsel %vm38, %v37, 0.0
    %41 = vrot.lane.b32.xlu0 %v39, 127
    %v42 = vpop.permute.xlu0 %41
    %v44 = vadd.f32 %v30, %v42
    %46 = vrot.lane.b32.xlu0 %v44, 127
    %v47 = vpop.permute.xlu0 %46
    %vm49 = vcmask 7168
    %v50 = vsel %vm49, %v47, 0.0
    %51 = vadd.xlane.f32.xlu0 %v50
    %v52 = vpop.xlane.xlu0 %51
    %v53 = vrot.slane %v52, 4
    %v54 = vadd.f32 %v52, %v53
    %v55 = vrot.slane %v54, 2
    %v56 = vadd.f32 %v54, %v55
    %v57 = vrot.slane %v56, 1
    %v58 = vadd.f32 %v56, %v57
    %s59 = vtos %v58
    %s60 = sadd.f32 %s59, 0.0
    %v61 = vlaneseq
    %v62 = vshrl.u32 %v61, 7
    %vm63 = vcmp.eq.s32.totalorder %v62, 0
    %vm64 = vcmp.eq.s32.totalorder %v13, 0
    %vm65 = vmand %vm63, %vm64
    %v66 = vstv %s60
    %v67 = vsel %vm65, %v66, 0.0
    %68 = vst [vmem:[#allocation2] sm:$0xff] %v67
    // Predicated region
    $region10: #{tpu_custom_call.1} parent=1 // pred_check
      _
    $region11: #{tpu_custom_call.1} parent=1 // pred_check_branch
      %70 = sbr.rel (0) target = $region13
    $region12: #{tpu_custom_call.1} parent=1 // pred_region
      %s72 = ssub.s32 128, 128
      %73 = vsyncadd [#allocation3], %s72
      %s75 = sshll.u32 [#allocation2], 4
      %s76 = int_to_ptr.vmem [resolvable:$true] %s75
      %78 = dma.vmem_to_hbm [thread:$0]  %s76, 128, %s2, [#allocation3]
    $region13: #{tpu_custom_call.1} parent=1 // pred_fallthru
      _
    // Predicated region
    $region14: #{tpu_custom_call.1} parent=1 // pred_check
      _
    $region15: #{tpu_custom_call.1} parent=1 // pred_check_branch
      %80 = sbr.rel (0) target = $region17
    $region16: #{tpu_custom_call.1} parent=1 // pred_region
      %81 = dma.done [#allocation3], 128
    $region17: #{tpu_custom_call.1} parent=1 // pred_fallthru
      _
    %82 = vsyncpa [#allocation3], 1

</llo_original>
